<compile_context>
chip_gen: v7x
topology: tpu7x:2x2x1
jax: 0.10.0
libtpu: 0.0.40
codegen_flags: <defaults>
</compile_context>

<pallas_src>
import functools
import math

import jax
import jax.numpy as jnp
from jax import lax
from jax.experimental import pallas as pl
from jax.experimental.pallas import tpu as pltpu

_EPS = 1e-8  # nn.CosineSimilarity default eps


def _cluster_loss_kernel(ci_kb_ref, cj_kb_ref, ci_bk_ref, cj_bk_ref, o_ref, *,
                         class_num, temperature, matmul_dtype):
    K = class_num
    N = 2 * K
    inv_sqrt_t = float(1.0 / math.sqrt(temperature))

    ci_kb = ci_kb_ref[...].astype(jnp.float32)   # (K, B) == c_i.t()
    cj_kb = cj_kb_ref[...].astype(jnp.float32)   # (K, B) == c_j.t()
    ci_bk = ci_bk_ref[...].astype(jnp.float32)   # (B, K) == c_i
    cj_bk = cj_bk_ref[...].astype(jnp.float32)   # (B, K) == c_j

    # ---- entropy regularizer ne_i + ne_j ------------------------------------
    # (p*log(p) is NaN for an exactly-zero cluster column, same as the PyTorch
    #  original; inputs are softmax probabilities so this cannot happen.)
    def neg_entropy(c_bk):
        s = jnp.sum(c_bk, axis=0, keepdims=True)          # (1, K)
        p = s / jnp.sum(s)
        return math.log(K) + jnp.sum(p * jnp.log(p))

    ne_loss = neg_entropy(ci_bk) + neg_entropy(cj_bk)

    # ---- pre-normalized MXU operands ----------------------------------------
    # scale_a = 1 / (max(||col_a||, eps) * sqrt(temperature)); applied to both
    # matmul operands, every Gram block equals cos_sim / temperature directly.
    def operands(c_kb, c_bk):
        n2_row = jnp.sum(c_kb * c_kb, axis=1, keepdims=True)         # (K, 1)
        n2_col = jnp.sum(c_bk * c_bk, axis=0, keepdims=True)         # (1, K)
        s_row = lax.rsqrt(jnp.maximum(n2_row, _EPS * _EPS)) * inv_sqrt_t
        s_col = lax.rsqrt(jnp.maximum(n2_col, _EPS * _EPS)) * inv_sqrt_t
        lhs = (c_kb * s_row).astype(matmul_dtype)                    # (K, B)
        rhs = (c_bk * s_col).astype(matmul_dtype)                    # (B, K)
        return lhs, rhs

    lhs_i, rhs_i = operands(ci_kb, ci_bk)
    lhs_j, rhs_j = operands(cj_kb, cj_bk)

    dot = functools.partial(jnp.dot, preferred_element_type=jnp.float32)
    # 2x2 block Gram: sim = [[g_ii, g_ij], [g_ji, g_jj]], each (K, K).
    g_ii = dot(lhs_i, rhs_i)
    g_ij = dot(lhs_i, rhs_j)
    g_ji = dot(lhs_j, rhs_i)
    g_jj = dot(lhs_j, rhs_j)

    # Single KxK diag mask, reused for self-sim exclusion and positive pick.
    diag = (lax.broadcasted_iota(jnp.int32, (K, K), 0) ==
            lax.broadcasted_iota(jnp.int32, (K, K), 1))

    def half_ce(self_block, cross_block):
        # One half (K rows) of CrossEntropy(label 0, reduction='sum'):
        #   per row: logsumexp(row of sim minus its main-diagonal entry) - pos,
        # where pos = diagonal of the cross block (the positive pair).
        off = jnp.where(diag, -jnp.inf, self_block)
        m = jnp.maximum(jnp.max(off, axis=1, keepdims=True),
                        jnp.max(cross_block, axis=1, keepdims=True))
        s = (jnp.sum(jnp.exp(off - m), axis=1, keepdims=True) +
             jnp.sum(jnp.exp(cross_block - m), axis=1, keepdims=True))
        lse = m + jnp.log(s)
        pos = jnp.sum(jnp.where(diag, cross_block, 0.0), axis=1, keepdims=True)
        return jnp.sum(lse - pos)

    ce_sum = half_ce(g_ii, g_ij) + half_ce(g_jj, g_ji)
    o_ref[0, 0] = (ce_sum / N + ne_loss).astype(jnp.float32)


def cluster_loss(c_i, c_j, class_num, temperature, matmul_dtype=jnp.bfloat16):
    B, K = c_i.shape
    assert K == class_num and c_j.shape == (B, K)
    c_i = c_i.astype(jnp.float32)
    c_j = c_j.astype(jnp.float32)
    # Layout plumbing in the wrapper (not compute hoisting): hand the kernel
    # both orientations so the MXU sees plain (K,B)@(B,K) contractions and no
    # in-kernel XLU transpose / lane-axis concat is needed.
    ci_kb, cj_kb = c_i.T, c_j.T

    kernel = functools.partial(
        _cluster_loss_kernel, class_num=K, temperature=float(temperature),
        matmul_dtype=matmul_dtype)

    # VMEM budget: 4 KxK f32 Gram blocks + ~3 KxK temporaries + the 4 inputs.
    est = (4 + 3) * K * K * 4 + 8 * B * K * 4 + (2 << 20)
    vmem_limit = int(min(max(est, 32 << 20), 64 << 20))  # cap at v7x physical

    out = pl.pallas_call(
        kernel,
        out_shape=jax.ShapeDtypeStruct((1, 1), jnp.float32),
        in_specs=[pl.BlockSpec(memory_space=pltpu.MemorySpace.VMEM)
                  for _ in range(4)],
        out_specs=pl.BlockSpec(memory_space=pltpu.MemorySpace.SMEM),
        compiler_params=pltpu.CompilerParams(vmem_limit_bytes=vmem_limit),
    )(ci_kb, cj_kb, c_i, c_j)
    return out[0, 0]


def cluster_loss_ref_exact(c_i, c_j, class_num, temperature):
    """Pure-JAX f32 reference mirroring the PyTorch forward exactly."""
    K = class_num
    N = 2 * K
    p_i = c_i.sum(0)
    p_i = p_i / p_i.sum()
    ne_i = math.log(K) + (p_i * jnp.log(p_i)).sum()
    p_j = c_j.sum(0)
    p_j = p_j / p_j.sum()
    ne_j = math.log(K) + (p_j * jnp.log(p_j)).sum()
    c = jnp.concatenate([c_i.T, c_j.T], axis=0)          # (N, B)
    norm = jnp.linalg.norm(c, axis=1)
    denom = jnp.maximum(norm[:, None] * norm[None, :], _EPS)
    sim = (c @ c.T) / denom / temperature
    pos = jnp.concatenate([jnp.diagonal(sim, K), jnp.diagonal(sim, -K)])
    diag = jnp.eye(N, dtype=bool)
    lse = jax.scipy.special.logsumexp(jnp.where(diag, -jnp.inf, sim), axis=1)
    return jnp.sum(lse - pos) / N + ne_i + ne_j


def cluster_loss_ref_mxu(c_i, c_j, class_num, temperature,
                         matmul_dtype=jnp.bfloat16):
    """Reference mirroring the kernel's numerics (pre-normalized operands cast
    to matmul_dtype, f32 accumulation) for a tight comparison."""
    K = class_num
    N = 2 * K
    inv_sqrt_t = 1.0 / math.sqrt(temperature)
    p_i = c_i.sum(0)
    p_i = p_i / p_i.sum()
    ne_i = math.log(K) + (p_i * jnp.log(p_i)).sum()
    p_j = c_j.sum(0)
    p_j = p_j / p_j.sum()
    ne_j = math.log(K) + (p_j * jnp.log(p_j)).sum()
    C = jnp.concatenate([c_i, c_j], axis=1)              # (B, N), cols = feats
    n2 = jnp.sum(C * C, axis=0, keepdims=True)
    Cn = (C * lax.rsqrt(jnp.maximum(n2, _EPS * _EPS)) * inv_sqrt_t)
    Cn = Cn.astype(matmul_dtype)
    sim = jnp.dot(Cn.T, Cn, preferred_element_type=jnp.float32)   # (N, N)
    pos = jnp.concatenate([jnp.diagonal(sim, K), jnp.diagonal(sim, -K)])
    diag = jnp.eye(N, dtype=bool)
    lse = jax.scipy.special.logsumexp(jnp.where(diag, -jnp.inf, sim), axis=1)
    return jnp.sum(lse - pos) / N + ne_i + ne_j


if __name__ == "__main__":
    key = jax.random.PRNGKey(0)
    B, K = 8, 4          # batch, class_num
    temperature = 0.5
    k1, k2 = jax.random.split(key)
    # Cluster assignment probabilities (softmax outputs), like the real model.
    c_i = jax.nn.softmax(jax.random.normal(k1, (B, K), jnp.float32), axis=1)
    c_j = jax.nn.softmax(jax.random.normal(k2, (B, K), jnp.float32), axis=1)

    out = cluster_loss(c_i, c_j, K, temperature)
    out = jax.block_until_ready(out)

    # Tight check vs. a reference with the same bf16-operand MXU numerics ...
    ref_mxu = cluster_loss_ref_mxu(c_i, c_j, K, temperature)
    assert jnp.allclose(out, ref_mxu, atol=2e-3, rtol=2e-3), (out, ref_mxu)
    # ... and a sanity check vs. the exact-f32 PyTorch-semantics reference
    # (looser tolerance accounts for bf16 operand rounding in the Gram).
    ref_exact = cluster_loss_ref_exact(c_i, c_j, K, temperature)
    assert jnp.allclose(out, ref_exact, atol=2e-2, rtol=2e-2), (out, ref_exact)
    print("KERNEL_OK")
</pallas_src>

<mosaic_0001>
module attributes {stable_mosaic.version = 11 : i64} {
  func.func @_cluster_loss_kernel(%arg0: memref<4x8xf32, #tpu.memory_space<vmem>>, %arg1: memref<4x8xf32, #tpu.memory_space<vmem>>, %arg2: memref<8x4xf32, #tpu.memory_space<vmem>>, %arg3: memref<8x4xf32, #tpu.memory_space<vmem>>, %arg4: memref<1x1xf32, #tpu.memory_space<smem>>) attributes {dimension_semantics = [], scalar_prefetch = 0 : i64, scratch_operands = 0 : i64, tpu.core_type = #tpu.core_type<tc>} {
    %c0 = arith.constant 0 : index
    %c0_0 = arith.constant 0 : index
    %0 = vector.load %arg0[%c0, %c0_0] : memref<4x8xf32, #tpu.memory_space<vmem>>, vector<4x8xf32>
    %c0_1 = arith.constant 0 : index
    %c0_2 = arith.constant 0 : index
    %1 = vector.load %arg1[%c0_1, %c0_2] : memref<4x8xf32, #tpu.memory_space<vmem>>, vector<4x8xf32>
    %c0_3 = arith.constant 0 : index
    %c0_4 = arith.constant 0 : index
    %2 = vector.load %arg2[%c0_3, %c0_4] : memref<8x4xf32, #tpu.memory_space<vmem>>, vector<8x4xf32>
    %c0_5 = arith.constant 0 : index
    %c0_6 = arith.constant 0 : index
    %3 = vector.load %arg3[%c0_5, %c0_6] : memref<8x4xf32, #tpu.memory_space<vmem>>, vector<8x4xf32>
    %cst = arith.constant dense<0.000000e+00> : vector<4xf32>
    %4 = vector.multi_reduction <add>, %2, %cst [0] : vector<8x4xf32> to vector<4xf32>
    %5 = vector.shape_cast %4 : vector<4xf32> to vector<1x4xf32>
    %6 = vector.shape_cast %5 : vector<1x4xf32> to vector<1x1x4xf32>
    %cst_7 = arith.constant dense<0.000000e+00> : vector<1xf32>
    %7 = vector.multi_reduction <add>, %6, %cst_7 [1, 2] : vector<1x1x4xf32> to vector<1xf32>
    %8 = vector.shape_cast %7 : vector<1xf32> to vector<1x1x1xf32>
    %9 = vector.extract %8[0, 0, 0] : f32 from vector<1x1x1xf32>
    %10 = vector.broadcast %9 : f32 to vector<1x4xf32>
    %11 = arith.divf %5, %10 : vector<1x4xf32>
    %12 = math.log %11 : vector<1x4xf32>
    %13 = arith.mulf %11, %12 : vector<1x4xf32>
    %14 = vector.shape_cast %13 : vector<1x4xf32> to vector<1x1x4xf32>
    %cst_8 = arith.constant dense<0.000000e+00> : vector<1xf32>
    %15 = vector.multi_reduction <add>, %14, %cst_8 [1, 2] : vector<1x1x4xf32> to vector<1xf32>
    %16 = vector.shape_cast %15 : vector<1xf32> to vector<1x1x1xf32>
    %17 = vector.extract %16[0, 0, 0] : f32 from vector<1x1x1xf32>
    %cst_9 = arith.constant 1.38629436 : f32
    %18 = arith.addf %cst_9, %17 : f32
    %cst_10 = arith.constant dense<0.000000e+00> : vector<4xf32>
    %19 = vector.multi_reduction <add>, %3, %cst_10 [0] : vector<8x4xf32> to vector<4xf32>
    %20 = vector.shape_cast %19 : vector<4xf32> to vector<1x4xf32>
    %21 = vector.shape_cast %20 : vector<1x4xf32> to vector<1x1x4xf32>
    %cst_11 = arith.constant dense<0.000000e+00> : vector<1xf32>
    %22 = vector.multi_reduction <add>, %21, %cst_11 [1, 2] : vector<1x1x4xf32> to vector<1xf32>
    %23 = vector.shape_cast %22 : vector<1xf32> to vector<1x1x1xf32>
    %24 = vector.extract %23[0, 0, 0] : f32 from vector<1x1x1xf32>
    %25 = vector.broadcast %24 : f32 to vector<1x4xf32>
    %26 = arith.divf %20, %25 : vector<1x4xf32>
    %27 = math.log %26 : vector<1x4xf32>
    %28 = arith.mulf %26, %27 : vector<1x4xf32>
    %29 = vector.shape_cast %28 : vector<1x4xf32> to vector<1x1x4xf32>
    %cst_12 = arith.constant dense<0.000000e+00> : vector<1xf32>
    %30 = vector.multi_reduction <add>, %29, %cst_12 [1, 2] : vector<1x1x4xf32> to vector<1xf32>
    %31 = vector.shape_cast %30 : vector<1xf32> to vector<1x1x1xf32>
    %32 = vector.extract %31[0, 0, 0] : f32 from vector<1x1x1xf32>
    %cst_13 = arith.constant 1.38629436 : f32
    %33 = arith.addf %cst_13, %32 : f32
    %34 = arith.addf %18, %33 : f32
    %35 = arith.mulf %0, %0 : vector<4x8xf32>
    %cst_14 = arith.constant dense<0.000000e+00> : vector<4xf32>
    %36 = vector.multi_reduction <add>, %35, %cst_14 [1] : vector<4x8xf32> to vector<4xf32>
    %37 = vector.shape_cast %36 : vector<4xf32> to vector<4x1xf32>
    %38 = arith.mulf %2, %2 : vector<8x4xf32>
    %cst_15 = arith.constant dense<0.000000e+00> : vector<4xf32>
    %39 = vector.multi_reduction <add>, %38, %cst_15 [0] : vector<8x4xf32> to vector<4xf32>
    %40 = vector.shape_cast %39 : vector<4xf32> to vector<1x4xf32>
    %cst_16 = arith.constant 1.000000e-16 : f32
    %41 = vector.broadcast %cst_16 : f32 to vector<4x1xf32>
    %42 = arith.maximumf %37, %41 : vector<4x1xf32>
    %43 = math.rsqrt %42 : vector<4x1xf32>
    %cst_17 = arith.constant 1.41421354 : f32
    %44 = vector.broadcast %cst_17 : f32 to vector<4x1xf32>
    %45 = arith.mulf %43, %44 : vector<4x1xf32>
    %cst_18 = arith.constant 1.000000e-16 : f32
    %46 = vector.broadcast %cst_18 : f32 to vector<1x4xf32>
    %47 = arith.maximumf %40, %46 : vector<1x4xf32>
    %48 = math.rsqrt %47 : vector<1x4xf32>
    %cst_19 = arith.constant 1.41421354 : f32
    %49 = vector.broadcast %cst_19 : f32 to vector<1x4xf32>
    %50 = arith.mulf %48, %49 : vector<1x4xf32>
    %51 = vector.broadcast %45 : vector<4x1xf32> to vector<4x8xf32>
    %52 = arith.mulf %0, %51 : vector<4x8xf32>
    %53 = arith.truncf %52 : vector<4x8xf32> to vector<4x8xbf16>
    %54 = vector.broadcast %50 : vector<1x4xf32> to vector<8x4xf32>
    %55 = arith.mulf %2, %54 : vector<8x4xf32>
    %56 = arith.truncf %55 : vector<8x4xf32> to vector<8x4xbf16>
    %57 = arith.mulf %1, %1 : vector<4x8xf32>
    %cst_20 = arith.constant dense<0.000000e+00> : vector<4xf32>
    %58 = vector.multi_reduction <add>, %57, %cst_20 [1] : vector<4x8xf32> to vector<4xf32>
    %59 = vector.shape_cast %58 : vector<4xf32> to vector<4x1xf32>
    %60 = arith.mulf %3, %3 : vector<8x4xf32>
    %cst_21 = arith.constant dense<0.000000e+00> : vector<4xf32>
    %61 = vector.multi_reduction <add>, %60, %cst_21 [0] : vector<8x4xf32> to vector<4xf32>
    %62 = vector.shape_cast %61 : vector<4xf32> to vector<1x4xf32>
    %cst_22 = arith.constant 1.000000e-16 : f32
    %63 = vector.broadcast %cst_22 : f32 to vector<4x1xf32>
    %64 = arith.maximumf %59, %63 : vector<4x1xf32>
    %65 = math.rsqrt %64 : vector<4x1xf32>
    %cst_23 = arith.constant 1.41421354 : f32
    %66 = vector.broadcast %cst_23 : f32 to vector<4x1xf32>
    %67 = arith.mulf %65, %66 : vector<4x1xf32>
    %cst_24 = arith.constant 1.000000e-16 : f32
    %68 = vector.broadcast %cst_24 : f32 to vector<1x4xf32>
    %69 = arith.maximumf %62, %68 : vector<1x4xf32>
    %70 = math.rsqrt %69 : vector<1x4xf32>
    %cst_25 = arith.constant 1.41421354 : f32
    %71 = vector.broadcast %cst_25 : f32 to vector<1x4xf32>
    %72 = arith.mulf %70, %71 : vector<1x4xf32>
    %73 = vector.broadcast %67 : vector<4x1xf32> to vector<4x8xf32>
    %74 = arith.mulf %1, %73 : vector<4x8xf32>
    %75 = arith.truncf %74 : vector<4x8xf32> to vector<4x8xbf16>
    %76 = vector.broadcast %72 : vector<1x4xf32> to vector<8x4xf32>
    %77 = arith.mulf %3, %76 : vector<8x4xf32>
    %78 = arith.truncf %77 : vector<8x4xf32> to vector<8x4xbf16>
    %cst_26 = arith.constant dense<0.000000e+00> : vector<4x4xf32>
    %79 = tpu.matmul %53, %56, %cst_26 {dimension_numbers = #tpu.dot_dimension_numbers<[1], [0], [0], [1], [0, 0, 1, 1], [], []>} : vector<4x8xbf16>, vector<8x4xbf16>, vector<4x4xf32> -> vector<4x4xf32>
    %cst_27 = arith.constant dense<0.000000e+00> : vector<4x4xf32>
    %80 = tpu.matmul %53, %78, %cst_27 {dimension_numbers = #tpu.dot_dimension_numbers<[1], [0], [0], [1], [0, 0, 1, 1], [], []>} : vector<4x8xbf16>, vector<8x4xbf16>, vector<4x4xf32> -> vector<4x4xf32>
    %cst_28 = arith.constant dense<0.000000e+00> : vector<4x4xf32>
    %81 = tpu.matmul %75, %56, %cst_28 {dimension_numbers = #tpu.dot_dimension_numbers<[1], [0], [0], [1], [0, 0, 1, 1], [], []>} : vector<4x8xbf16>, vector<8x4xbf16>, vector<4x4xf32> -> vector<4x4xf32>
    %cst_29 = arith.constant dense<0.000000e+00> : vector<4x4xf32>
    %82 = tpu.matmul %75, %78, %cst_29 {dimension_numbers = #tpu.dot_dimension_numbers<[1], [0], [0], [1], [0, 0, 1, 1], [], []>} : vector<4x8xbf16>, vector<8x4xbf16>, vector<4x4xf32> -> vector<4x4xf32>
    %83 = tpu.iota {dimensions = array<i32: 0>} : vector<4x4xi32>
    %84 = tpu.iota {dimensions = array<i32: 1>} : vector<4x4xi32>
    %85 = arith.cmpi eq, %83, %84 : vector<4x4xi32>
    %cst_30 = arith.constant 0xFF800000 : f32
    %86 = vector.broadcast %cst_30 : f32 to vector<4x4xf32>
    %87 = arith.select %85, %86, %79 : vector<4x4xi1>, vector<4x4xf32>
    %cst_31 = arith.constant dense<0xFF800000> : vector<4xf32>
    %88 = vector.multi_reduction <maximumf>, %87, %cst_31 [1] : vector<4x4xf32> to vector<4xf32>
    %89 = vector.shape_cast %88 : vector<4xf32> to vector<4x1xf32>
    %cst_32 = arith.constant dense<0xFF800000> : vector<4xf32>
    %90 = vector.multi_reduction <maximumf>, %80, %cst_32 [1] : vector<4x4xf32> to vector<4xf32>
    %91 = vector.shape_cast %90 : vector<4xf32> to vector<4x1xf32>
    %92 = arith.maximumf %89, %91 : vector<4x1xf32>
    %93 = vector.broadcast %92 : vector<4x1xf32> to vector<4x4xf32>
    %94 = arith.subf %87, %93 : vector<4x4xf32>
    %95 = math.exp %94 : vector<4x4xf32>
    %cst_33 = arith.constant dense<0.000000e+00> : vector<4xf32>
    %96 = vector.multi_reduction <add>, %95, %cst_33 [1] : vector<4x4xf32> to vector<4xf32>
    %97 = vector.shape_cast %96 : vector<4xf32> to vector<4x1xf32>
    %98 = vector.broadcast %92 : vector<4x1xf32> to vector<4x4xf32>
    %99 = arith.subf %80, %98 : vector<4x4xf32>
    %100 = math.exp %99 : vector<4x4xf32>
    %cst_34 = arith.constant dense<0.000000e+00> : vector<4xf32>
    %101 = vector.multi_reduction <add>, %100, %cst_34 [1] : vector<4x4xf32> to vector<4xf32>
    %102 = vector.shape_cast %101 : vector<4xf32> to vector<4x1xf32>
    %103 = arith.addf %97, %102 : vector<4x1xf32>
    %104 = math.log %103 : vector<4x1xf32>
    %105 = arith.addf %92, %104 : vector<4x1xf32>
    %cst_35 = arith.constant 0.000000e+00 : f32
    %106 = vector.broadcast %cst_35 : f32 to vector<4x4xf32>
    %107 = arith.select %85, %80, %106 : vector<4x4xi1>, vector<4x4xf32>
    %cst_36 = arith.constant dense<0.000000e+00> : vector<4xf32>
    %108 = vector.multi_reduction <add>, %107, %cst_36 [1] : vector<4x4xf32> to vector<4xf32>
    %109 = vector.shape_cast %108 : vector<4xf32> to vector<4x1xf32>
    %110 = arith.subf %105, %109 : vector<4x1xf32>
    %111 = vector.shape_cast %110 : vector<4x1xf32> to vector<1x4x1xf32>
    %cst_37 = arith.constant dense<0.000000e+00> : vector<1xf32>
    %112 = vector.multi_reduction <add>, %111, %cst_37 [1, 2] : vector<1x4x1xf32> to vector<1xf32>
    %113 = vector.shape_cast %112 : vector<1xf32> to vector<1x1x1xf32>
    %114 = vector.extract %113[0, 0, 0] : f32 from vector<1x1x1xf32>
    %cst_38 = arith.constant 0xFF800000 : f32
    %115 = vector.broadcast %cst_38 : f32 to vector<4x4xf32>
    %116 = arith.select %85, %115, %82 : vector<4x4xi1>, vector<4x4xf32>
    %cst_39 = arith.constant dense<0xFF800000> : vector<4xf32>
    %117 = vector.multi_reduction <maximumf>, %116, %cst_39 [1] : vector<4x4xf32> to vector<4xf32>
    %118 = vector.shape_cast %117 : vector<4xf32> to vector<4x1xf32>
    %cst_40 = arith.constant dense<0xFF800000> : vector<4xf32>
    %119 = vector.multi_reduction <maximumf>, %81, %cst_40 [1] : vector<4x4xf32> to vector<4xf32>
    %120 = vector.shape_cast %119 : vector<4xf32> to vector<4x1xf32>
    %121 = arith.maximumf %118, %120 : vector<4x1xf32>
    %122 = vector.broadcast %121 : vector<4x1xf32> to vector<4x4xf32>
    %123 = arith.subf %116, %122 : vector<4x4xf32>
    %124 = math.exp %123 : vector<4x4xf32>
    %cst_41 = arith.constant dense<0.000000e+00> : vector<4xf32>
    %125 = vector.multi_reduction <add>, %124, %cst_41 [1] : vector<4x4xf32> to vector<4xf32>
    %126 = vector.shape_cast %125 : vector<4xf32> to vector<4x1xf32>
    %127 = vector.broadcast %121 : vector<4x1xf32> to vector<4x4xf32>
    %128 = arith.subf %81, %127 : vector<4x4xf32>
    %129 = math.exp %128 : vector<4x4xf32>
    %cst_42 = arith.constant dense<0.000000e+00> : vector<4xf32>
    %130 = vector.multi_reduction <add>, %129, %cst_42 [1] : vector<4x4xf32> to vector<4xf32>
    %131 = vector.shape_cast %130 : vector<4xf32> to vector<4x1xf32>
    %132 = arith.addf %126, %131 : vector<4x1xf32>
    %133 = math.log %132 : vector<4x1xf32>
    %134 = arith.addf %121, %133 : vector<4x1xf32>
    %cst_43 = arith.constant 0.000000e+00 : f32
    %135 = vector.broadcast %cst_43 : f32 to vector<4x4xf32>
    %136 = arith.select %85, %81, %135 : vector<4x4xi1>, vector<4x4xf32>
    %cst_44 = arith.constant dense<0.000000e+00> : vector<4xf32>
    %137 = vector.multi_reduction <add>, %136, %cst_44 [1] : vector<4x4xf32> to vector<4xf32>
    %138 = vector.shape_cast %137 : vector<4xf32> to vector<4x1xf32>
    %139 = arith.subf %134, %138 : vector<4x1xf32>
    %140 = vector.shape_cast %139 : vector<4x1xf32> to vector<1x4x1xf32>
    %cst_45 = arith.constant dense<0.000000e+00> : vector<1xf32>
    %141 = vector.multi_reduction <add>, %140, %cst_45 [1, 2] : vector<1x4x1xf32> to vector<1xf32>
    %142 = vector.shape_cast %141 : vector<1xf32> to vector<1x1x1xf32>
    %143 = vector.extract %142[0, 0, 0] : f32 from vector<1x1x1xf32>
    %144 = arith.addf %114, %143 : f32
    %cst_46 = arith.constant 8.000000e+00 : f32
    %145 = arith.divf %144, %cst_46 : f32
    %146 = arith.addf %145, %34 : f32
    %c0_47 = arith.constant 0 : index
    %c0_48 = arith.constant 0 : index
    %147 = memref.load %arg4[%c0_47, %c0_48] : memref<1x1xf32, #tpu.memory_space<smem>>
    memref.store %146, %arg4[%c0_47, %c0_48] : memref<1x1xf32, #tpu.memory_space<smem>>
    return
  }
}

</mosaic_0001>

<llo_original>
// kernel: tpu_custom_call.1
$region0: #{tpu_custom_call.1}
  #allocation0 [shape = 'u32[]', space=smem, size = 0x4, offset = 0x4, fixed_abs, tag = 'smem constant byte address 0x4 - core index']
  #allocation1 [shape = 'u32[144,128]{1,0:T(1,128)}', space=vmem, size = 0x12000, scoped, tag = 'internal scratch']
  %s0 = inlined_call_operand.vmem [shape: f32[4,8], index: 0, kind: input, shape index: {}]
  %s1 = inlined_call_operand.vmem [shape: f32[4,8], index: 1, kind: input, shape index: {}]
  %s2 = inlined_call_operand.vmem [shape: f32[8,4], index: 2, kind: input, shape index: {}]
  %s3 = inlined_call_operand.vmem [shape: f32[8,4], index: 3, kind: input, shape index: {}]
  %s4 = inlined_call_operand.hbm [shape: f32[1,1], index: 4, kind: output, shape index: {}]
  %s5 = sld [smem:[#allocation0]]
  $region26: #{tpu_custom_call.1} parent=0
    _
  %s7 = ssub.s32 1, %s5
  %s8 = scalar_select 0, %s7, %s5
  $region1: #{tpu_custom_call.1} parent=0
    #allocation2 [shape = 'u8[512]{0}', space=smem, size = 0x200, scoped, tag = 'output window, operand 0, single buffered']
    #allocation3 [shape = 's32[1]{0}', space=sflag, size = 0x4, scoped, tag = 'scoped memory for tpu_custom_call.1']
    %9 = vsyncpa [#allocation3], 0
    // Predicated region
    $region2: #{tpu_custom_call.1} parent=1 // pred_check
      _
    $region3: #{tpu_custom_call.1} parent=1 // pred_check_branch
      %11 = sbr.rel (0) target = $region5
    $region4: #{tpu_custom_call.1} parent=1 // pred_region
      _
    $region5: #{tpu_custom_call.1} parent=1 // pred_fallthru
      _
    // Predicated region
    $region6: #{tpu_custom_call.1} parent=1 // pred_check
      _
    $region7: #{tpu_custom_call.1} parent=1 // pred_check_branch
      %13 = sbr.rel (0) target = $region9
    $region8: #{tpu_custom_call.1} parent=1 // pred_region
      _
    $region9: #{tpu_custom_call.1} parent=1 // pred_fallthru
      _
    // Predicated region
    $region10: #{tpu_custom_call.1} parent=1 // pred_check
      _
    $region11: #{tpu_custom_call.1} parent=1 // pred_check_branch
      %15 = sbr.rel (0) target = $region13
    $region12: #{tpu_custom_call.1} parent=1 // pred_region
      _
    $region13: #{tpu_custom_call.1} parent=1 // pred_fallthru
      _
    // Predicated region
    $region14: #{tpu_custom_call.1} parent=1 // pred_check
      _
    $region15: #{tpu_custom_call.1} parent=1 // pred_check_branch
      %17 = sbr.rel (0) target = $region17
    $region16: #{tpu_custom_call.1} parent=1 // pred_region
      _
    $region17: #{tpu_custom_call.1} parent=1 // pred_fallthru
      _
    %v19 = vld [vmem:[%s0] sm:$0xf]
    %v20 = vld [vmem:[%s1] sm:$0xf]
    %v21 = vld [vmem:[%s2] sm:$0xff]
    %v22 = vld [vmem:[%s3] sm:$0xff]
    %vm23 = vcmask 31744
    %v24 = vsel %vm23, %v21, 0.0
    %v25 = vrot.slane %v24, 4
    %v26 = vadd.f32 %v24, %v25
    %v27 = vrot.slane %v26, 2
    %v28 = vadd.f32 %v26, %v27
    %v29 = vrot.slane %v28, 1
    %v30 = vadd.f32 %v28, %v29
    %vm31 = vcmask 24576
    %v32 = vsel %vm31, %v30, 0.0
    %33 = vadd.xlane.f32.xlu0 %v32
    %v34 = vpop.xlane.xlu0 %33
    %v35 = vrot.slane %v34, 4
    %v36 = vadd.f32 %v34, %v35
    %v37 = vrot.slane %v36, 2
    %v38 = vadd.f32 %v36, %v37
    %v39 = vrot.slane %v38, 1
    %v40 = vadd.f32 %v38, %v39
    %s41 = vtos %v40
    %v42 = vstv %s41
    %v43 = vrcp.pop %v42
    %v44 = vmul.f32 %v30, %v43
    %v45 = vlog2.pop %v44
    %v46 = vmul.f32 %v45, 0.6931472
    %v47 = vmul.f32 %v44, %v46
    %v48 = vsel %vm31, %v47, 0.0
    %49 = vadd.xlane.f32.xlu0 %v48
    %v50 = vpop.xlane.xlu0 %49
    %v51 = vrot.slane %v50, 4
    %v52 = vadd.f32 %v50, %v51
    %v53 = vrot.slane %v52, 2
    %v54 = vadd.f32 %v52, %v53
    %v55 = vrot.slane %v54, 1
    %v56 = vadd.f32 %v54, %v55
    %s57 = vtos %v56
    %s58 = sadd.f32 %s57, 1.3862944
    %v59 = vsel %vm23, %v22, 0.0
    %v60 = vrot.slane %v59, 4
    %v61 = vadd.f32 %v59, %v60
    %v62 = vrot.slane %v61, 2
    %v63 = vadd.f32 %v61, %v62
    %v64 = vrot.slane %v63, 1
    %v65 = vadd.f32 %v63, %v64
    %v66 = vsel %vm31, %v65, 0.0
    %67 = vadd.xlane.f32.xlu0 %v66
    %v68 = vpop.xlane.xlu0 %67
    %v69 = vrot.slane %v68, 4
    %v70 = vadd.f32 %v68, %v69
    %v71 = vrot.slane %v70, 2
    %v72 = vadd.f32 %v70, %v71
    %v73 = vrot.slane %v72, 1
    %v74 = vadd.f32 %v72, %v73
    %s75 = vtos %v74
    %v76 = vstv %s75
    %v77 = vrcp.pop %v76
    %v78 = vmul.f32 %v65, %v77
    %v79 = vlog2.pop %v78
    %v80 = vmul.f32 %v79, 0.6931472
    %v81 = vmul.f32 %v78, %v80
    %v82 = vsel %vm31, %v81, 0.0
    %83 = vadd.xlane.f32.xlu0 %v82
    %v84 = vpop.xlane.xlu0 %83
    %v85 = vrot.slane %v84, 4
    %v86 = vadd.f32 %v84, %v85
    %v87 = vrot.slane %v86, 2
    %v88 = vadd.f32 %v86, %v87
    %v89 = vrot.slane %v88, 1
    %v90 = vadd.f32 %v88, %v89
    %s91 = vtos %v90
    %s92 = sadd.f32 %s91, 1.3862944
    %s93 = sadd.f32 %s58, %s92
    %v94 = vmul.f32 %v19, %v19
    %vm95 = vcmask 60416
    %v96 = vsel %vm95, %v94, 0.0
    %97 = vadd.xlane.f32.xlu0 %v96
    %v98 = vpop.xlane.xlu0 %97
    %v99 = vmul.f32 %v21, %v21
    %v100 = vsel %vm23, %v99, 0.0
    %v101 = vrot.slane %v100, 4
    %v102 = vadd.f32 %v100, %v101
    %v103 = vrot.slane %v102, 2
    %v104 = vadd.f32 %v102, %v103
    %v105 = vrot.slane %v104, 1
    %v106 = vadd.f32 %v104, %v105
    %v107 = vmax.f32 %v98, 1e-16
    %v108 = vrsqrt.pop %v107
    %v109 = vmul.f32 %v108, 1.4142135
    %v110 = vmax.f32 %v106, 1e-16
    %v111 = vrsqrt.pop %v110
    %v112 = vmul.f32 %v111, 1.4142135
    %v113 = vmul.f32 %v19, %v109
    %v114 = vpack.c.bf16 %v113, %v113
    %v115 = vmul.f32 %v21, %v112
    %v116 = vpack.c.bf16 %v115, %v115
    %v117 = vmul.f32 %v20, %v20
    %v118 = vsel %vm95, %v117, 0.0
    %119 = vadd.xlane.f32.xlu0 %v118
    %v120 = vpop.xlane.xlu0 %119
    %v121 = vmul.f32 %v22, %v22
    %v122 = vsel %vm23, %v121, 0.0
    %v123 = vrot.slane %v122, 4
    %v124 = vadd.f32 %v122, %v123
    %v125 = vrot.slane %v124, 2
    %v126 = vadd.f32 %v124, %v125
    %v127 = vrot.slane %v126, 1
    %v128 = vadd.f32 %v126, %v127
    %v129 = vmax.f32 %v120, 1e-16
    %v130 = vrsqrt.pop %v129
    %v131 = vmul.f32 %v130, 1.4142135
    %v132 = vmax.f32 %v128, 1e-16
    %v133 = vrsqrt.pop %v132
    %v134 = vmul.f32 %v133, 1.4142135
    %v135 = vmul.f32 %v20, %v131
    %v136 = vpack.c.bf16 %v135, %v135
    %v137 = vmul.f32 %v22, %v134
    %v138 = vpack.c.bf16 %v137, %v137
    %vm139 = vcmask 64512
    %v141 = vsel %vm139, %v114, 0
    %vm143 = vcmask 1043456
    %v145 = vsel %vm143, %v116, 0
    %147 = vmatprep.subr.bf16.mxu0 0
    %148 = vmatpush1.bf16.msra.mxu0 %v145
    %149 = vmatprep.subr.bf16.mxu0 0
    %150 = vmatpush1.bf16.msra.mxu0 0
    %151 = vmatprep.subr.bf16.mxu0 0
    %152 = vmatpush1.bf16.msra.mxu0 0
    %153 = vmatprep.subr.bf16.mxu0 0
    %154 = vmatpush1.bf16.msra.mxu0 0
    %155 = vmatprep.subr.bf16.mxu0 0
    %156 = vmatpush1.bf16.msra.mxu0 0
    %157 = vmatprep.subr.bf16.mxu0 0
    %158 = vmatpush1.bf16.msra.mxu0 0
    %159 = vmatprep.subr.bf16.mxu0 0
    %160 = vmatpush1.bf16.msra.mxu0 0
    %161 = vmatprep.subr.bf16.mxu0 0
    %162 = vmatpush1.bf16.msra.mxu0 0
    %163 = vmatprep.subr.bf16.mxu0 0
    %164 = vmatpush1.bf16.msra.mxu0 0
    %165 = vmatprep.subr.bf16.mxu0 0
    %166 = vmatpush1.bf16.msra.mxu0 0
    %167 = vmatprep.subr.bf16.mxu0 0
    %168 = vmatpush1.bf16.msra.mxu0 0
    %169 = vmatprep.subr.bf16.mxu0 0
    %170 = vmatpush1.bf16.msra.mxu0 0
    %171 = vmatprep.subr.bf16.mxu0 0
    %172 = vmatpush1.bf16.msra.mxu0 0
    %173 = vmatprep.subr.bf16.mxu0 0
    %174 = vmatpush1.bf16.msra.mxu0 0
    %175 = vmatprep.subr.bf16.mxu0 0
    %176 = vmatpush1.bf16.msra.mxu0 0
    %177 = vmatprep.subr.bf16.mxu0 0
    %178 = vmatpush1.bf16.msra.mxu0 0
    %179 = vmatprep.mubr.bf16.mxu0 0
    %180 = vmatmul.mubr.bf16.gmra.mrb[0].mxu0 %v141
    %v181 = vpop.f32.mrb[0].mxu0
    %v182 = vadd.f32 0.0, %v181
    %v183 = vpop.f32.mrb[0].mxu0
    %v184 = vpop.f32.mrb[0].mxu0
    %v185 = vpop.f32.mrb[0].mxu0
    %186 = vdwg.mxu0
    %v188 = vsel %vm143, %v138, 0
    %190 = vmatprep.subr.bf16.mxu0 0
    %191 = vmatpush1.bf16.msra.mxu0 %v188
    %192 = vmatprep.subr.bf16.mxu0 0
    %193 = vmatpush1.bf16.msra.mxu0 0
    %194 = vmatprep.subr.bf16.mxu0 0
    %195 = vmatpush1.bf16.msra.mxu0 0
    %196 = vmatprep.subr.bf16.mxu0 0
    %197 = vmatpush1.bf16.msra.mxu0 0
    %198 = vmatprep.subr.bf16.mxu0 0
    %199 = vmatpush1.bf16.msra.mxu0 0
    %200 = vmatprep.subr.bf16.mxu0 0
    %201 = vmatpush1.bf16.msra.mxu0 0
    %202 = vmatprep.subr.bf16.mxu0 0
    %203 = vmatpush1.bf16.msra.mxu0 0
    %204 = vmatprep.subr.bf16.mxu0 0
    %205 = vmatpush1.bf16.msra.mxu0 0
    %206 = vmatprep.subr.bf16.mxu0 0
    %207 = vmatpush1.bf16.msra.mxu0 0
    %208 = vmatprep.subr.bf16.mxu0 0
    %209 = vmatpush1.bf16.msra.mxu0 0
    %210 = vmatprep.subr.bf16.mxu0 0
    %211 = vmatpush1.bf16.msra.mxu0 0
    %212 = vmatprep.subr.bf16.mxu0 0
    %213 = vmatpush1.bf16.msra.mxu0 0
    %214 = vmatprep.subr.bf16.mxu0 0
    %215 = vmatpush1.bf16.msra.mxu0 0
    %216 = vmatprep.subr.bf16.mxu0 0
    %217 = vmatpush1.bf16.msra.mxu0 0
    %218 = vmatprep.subr.bf16.mxu0 0
    %219 = vmatpush1.bf16.msra.mxu0 0
    %220 = vmatprep.subr.bf16.mxu0 0
    %221 = vmatpush1.bf16.msra.mxu0 0
    %222 = vmatprep.mubr.bf16.mxu0 0
    %223 = vmatmul.mubr.bf16.gmra.mrb[0].mxu0 %v141
    %v224 = vpop.f32.mrb[0].mxu0
    %v225 = vadd.f32 0.0, %v224
    %v226 = vpop.f32.mrb[0].mxu0
    %v227 = vpop.f32.mrb[0].mxu0
    %v228 = vpop.f32.mrb[0].mxu0
    %229 = vdwg.mxu0
    %v231 = vsel %vm139, %v136, 0
    %233 = vmatprep.subr.bf16.mxu0 0
    %234 = vmatpush1.bf16.msra.mxu0 %v145
    %235 = vmatprep.subr.bf16.mxu0 0
    %236 = vmatpush1.bf16.msra.mxu0 0
    %237 = vmatprep.subr.bf16.mxu0 0
    %238 = vmatpush1.bf16.msra.mxu0 0
    %239 = vmatprep.subr.bf16.mxu0 0
    %240 = vmatpush1.bf16.msra.mxu0 0
    %241 = vmatprep.subr.bf16.mxu0 0
    %242 = vmatpush1.bf16.msra.mxu0 0
    %243 = vmatprep.subr.bf16.mxu0 0
    %244 = vmatpush1.bf16.msra.mxu0 0
    %245 = vmatprep.subr.bf16.mxu0 0
    %246 = vmatpush1.bf16.msra.mxu0 0
    %247 = vmatprep.subr.bf16.mxu0 0
    %248 = vmatpush1.bf16.msra.mxu0 0
    %249 = vmatprep.subr.bf16.mxu0 0
    %250 = vmatpush1.bf16.msra.mxu0 0
    %251 = vmatprep.subr.bf16.mxu0 0
    %252 = vmatpush1.bf16.msra.mxu0 0
    %253 = vmatprep.subr.bf16.mxu0 0
    %254 = vmatpush1.bf16.msra.mxu0 0
    %255 = vmatprep.subr.bf16.mxu0 0
    %256 = vmatpush1.bf16.msra.mxu0 0
    %257 = vmatprep.subr.bf16.mxu0 0
    %258 = vmatpush1.bf16.msra.mxu0 0
    %259 = vmatprep.subr.bf16.mxu0 0
    %260 = vmatpush1.bf16.msra.mxu0 0
    %261 = vmatprep.subr.bf16.mxu0 0
    %262 = vmatpush1.bf16.msra.mxu0 0
    %263 = vmatprep.subr.bf16.mxu0 0
    %264 = vmatpush1.bf16.msra.mxu0 0
    %265 = vmatprep.mubr.bf16.mxu0 0
    %266 = vmatmul.mubr.bf16.gmra.mrb[0].mxu0 %v231
    %v267 = vpop.f32.mrb[0].mxu0
    %v268 = vadd.f32 0.0, %v267
    %v269 = vpop.f32.mrb[0].mxu0
    %v270 = vpop.f32.mrb[0].mxu0
    %v271 = vpop.f32.mrb[0].mxu0
    %272 = vdwg.mxu0
    %273 = vmatprep.subr.bf16.mxu0 0
    %274 = vmatpush1.bf16.msra.mxu0 %v188
    %275 = vmatprep.subr.bf16.mxu0 0
    %276 = vmatpush1.bf16.msra.mxu0 0
    %277 = vmatprep.subr.bf16.mxu0 0
    %278 = vmatpush1.bf16.msra.mxu0 0
    %279 = vmatprep.subr.bf16.mxu0 0
    %280 = vmatpush1.bf16.msra.mxu0 0
    %281 = vmatprep.subr.bf16.mxu0 0
    %282 = vmatpush1.bf16.msra.mxu0 0
    %283 = vmatprep.subr.bf16.mxu0 0
    %284 = vmatpush1.bf16.msra.mxu0 0
    %285 = vmatprep.subr.bf16.mxu0 0
    %286 = vmatpush1.bf16.msra.mxu0 0
    %287 = vmatprep.subr.bf16.mxu0 0
    %288 = vmatpush1.bf16.msra.mxu0 0
    %289 = vmatprep.subr.bf16.mxu0 0
    %290 = vmatpush1.bf16.msra.mxu0 0
    %291 = vmatprep.subr.bf16.mxu0 0
    %292 = vmatpush1.bf16.msra.mxu0 0
    %293 = vmatprep.subr.bf16.mxu0 0
    %294 = vmatpush1.bf16.msra.mxu0 0
    %295 = vmatprep.subr.bf16.mxu0 0
    %296 = vmatpush1.bf16.msra.mxu0 0
    %297 = vmatprep.subr.bf16.mxu0 0
    %298 = vmatpush1.bf16.msra.mxu0 0
    %299 = vmatprep.subr.bf16.mxu0 0
    %300 = vmatpush1.bf16.msra.mxu0 0
    %301 = vmatprep.subr.bf16.mxu0 0
    %302 = vmatpush1.bf16.msra.mxu0 0
    %303 = vmatprep.subr.bf16.mxu0 0
    %304 = vmatpush1.bf16.msra.mxu0 0
    %305 = vmatprep.mubr.bf16.mxu0 0
    %306 = vmatmul.mubr.bf16.gmra.mrb[0].mxu0 %v231
    %v307 = vpop.f32.mrb[0].mxu0
    %v308 = vadd.f32 0.0, %v307
    %v309 = vpop.f32.mrb[0].mxu0
    %v310 = vpop.f32.mrb[0].mxu0
    %v311 = vpop.f32.mrb[0].mxu0
    %312 = vdwg.mxu0
    %v313 = vlaneseq
    %v314 = vshrl.u32 %v313, 7
    %v315 = vlaneseq
    %v316 = vand.u32 %v315, 127
    %vm317 = vcmp.eq.s32.totalorder %v314, %v316
    %v318 = vsel %vm317, -inf, %v182
    %vm319 = vcmask 27648
    %v320 = vsel %vm319, %v318, -inf
    %321 = vmax.xlane.f32.xlu0 %v320
    %v322 = vpop.xlane.xlu0 %321
    %v323 = vsel %vm319, %v225, -inf
    %324 = vmax.xlane.f32.xlu0 %v323
    %v325 = vpop.xlane.xlu0 %324
    %v326 = vmax.f32 %v322, %v325
    %v327 = vsub.f32 %v318, %v326
    %v328 = vmul.f32 %v327, 1.442695
    %v329 = vpow.pop %v328
    %v330 = vsel %vm319, %v329, 0.0
    %331 = vadd.xlane.f32.xlu0 %v330
    %v332 = vpop.xlane.xlu0 %331
    %v333 = vsub.f32 %v225, %v326
    %v334 = vmul.f32 %v333, 1.442695
    %v335 = vpow.pop %v334
    %v336 = vsel %vm319, %v335, 0.0
    %337 = vadd.xlane.f32.xlu0 %v336
    %v338 = vpop.xlane.xlu0 %337
    %v339 = vadd.f32 %v332, %v338
    %v340 = vlog2.pop %v339
    %v341 = vmul.f32 %v340, 0.6931472
    %v342 = vadd.f32 %v326, %v341
    %v343 = vsel %vm317, %v225, 0.0
    %v344 = vsel %vm319, %v343, 0.0
    %345 = vadd.xlane.f32.xlu0 %v344
    %v346 = vpop.xlane.xlu0 %345
    %v347 = vsub.f32 %v342, %v346
    %vm348 = vcmask 3072
    %v349 = vsel %vm348, %v347, 0.0
    %350 = vadd.xlane.f32.xlu0 %v349
    %v351 = vpop.xlane.xlu0 %350
    %v352 = vrot.slane %v351, 4
    %v353 = vadd.f32 %v351, %v352
    %v354 = vrot.slane %v353, 2
    %v355 = vadd.f32 %v353, %v354
    %v356 = vrot.slane %v355, 1
    %v357 = vadd.f32 %v355, %v356
    %s358 = vtos %v357
    %v359 = vsel %vm317, -inf, %v308
    %v360 = vsel %vm319, %v359, -inf
    %361 = vmax.xlane.f32.xlu0 %v360
    %v362 = vpop.xlane.xlu0 %361
    %v363 = vsel %vm319, %v268, -inf
    %364 = vmax.xlane.f32.xlu0 %v363
    %v365 = vpop.xlane.xlu0 %364
    %v366 = vmax.f32 %v362, %v365
    %v367 = vsub.f32 %v359, %v366
    %v368 = vmul.f32 %v367, 1.442695
    %v369 = vpow.pop %v368
    %v370 = vsel %vm319, %v369, 0.0
    %371 = vadd.xlane.f32.xlu0 %v370
    %v372 = vpop.xlane.xlu0 %371
    %v373 = vsub.f32 %v268, %v366
    %v374 = vmul.f32 %v373, 1.442695
    %v375 = vpow.pop %v374
    %v376 = vsel %vm319, %v375, 0.0
    %377 = vadd.xlane.f32.xlu0 %v376
    %v378 = vpop.xlane.xlu0 %377
    %v379 = vadd.f32 %v372, %v378
    %v380 = vlog2.pop %v379
    %v381 = vmul.f32 %v380, 0.6931472
    %v382 = vadd.f32 %v366, %v381
    %v383 = vsel %vm317, %v268, 0.0
    %v384 = vsel %vm319, %v383, 0.0
    %385 = vadd.xlane.f32.xlu0 %v384
    %v386 = vpop.xlane.xlu0 %385
    %v387 = vsub.f32 %v382, %v386
    %v388 = vsel %vm348, %v387, 0.0
    %389 = vadd.xlane.f32.xlu0 %v388
    %v390 = vpop.xlane.xlu0 %389
    %v391 = vrot.slane %v390, 4
    %v392 = vadd.f32 %v390, %v391
    %v393 = vrot.slane %v392, 2
    %v394 = vadd.f32 %v392, %v393
    %v395 = vrot.slane %v394, 1
    %v396 = vadd.f32 %v394, %v395
    %s397 = vtos %v396
    %s398 = sadd.f32 %s358, %s397
    %v399 = vrcp.pop 8.0
    %s400 = vtos %v399
    %s401 = smul.f32 %s398, %s400
    %s402 = sadd.f32 %s401, %s93
    %s403 = scalar_lea.smem [#allocation2], 0
    %404 = sst [smem:[%s403]] %s402
    // Predicated region
    $region18: #{tpu_custom_call.1} parent=1 // pred_check
      _
    $region19: #{tpu_custom_call.1} parent=1 // pred_check_branch
      %406 = sbr.rel (0) target = $region21
    $region20: #{tpu_custom_call.1} parent=1 // pred_region
      %s408 = ssub.s32 16, 16
      %409 = vsyncadd [#allocation3], %s408
      %412 = dma.smem_to_hbm [#allocation2], 16, %s4, [#allocation3]
    $region21: #{tpu_custom_call.1} parent=1 // pred_fallthru
      _
    // Predicated region
    $region22: #{tpu_custom_call.1} parent=1 // pred_check
      _
    $region23: #{tpu_custom_call.1} parent=1 // pred_check_branch
      %414 = sbr.rel (0) target = $region25
    $region24: #{tpu_custom_call.1} parent=1 // pred_region
      %415 = dma.done [#allocation3], 16
    $region25: #{tpu_custom_call.1} parent=1 // pred_fallthru
      _
    %416 = sfence
    %417 = vsyncpa [#allocation3], 1

</llo_original>
